<compile_context>
chip_gen: v6e
topology: v6e:2x2x1
jax: 0.10.0
libtpu: 0.0.40
codegen_flags: <defaults>
</compile_context>

<pallas_src>
import numpy as np
import jax
import jax.numpy as jnp
from jax.experimental import pallas as pl
from jax.experimental.pallas import tpu as pltpu


# ----------------------------------------------------------------------------
# FLAGS (deterministic, synthetic — the original reads absl flags)
# ----------------------------------------------------------------------------
class _Flags:
    recon_n_w = 1.0
    recon_d_w = 1.0
    recon_f_w = 1.0
    recon_s_w = 1.0
    recon_c_w = 1.0


FLAGS = _Flags()


def _cdiv(a, b):
    return -(-a // b)


def _default_tile_n():
    """Per-generation point-tile default (v5e: 16K, v6e/v7x: 32K)."""
    try:
        kind = jax.devices()[0].device_kind.lower()
    except Exception:
        kind = ""
    if "v5 lite" in kind or "v5e" in kind or "v5litepod" in kind:
        return 16384
    return 32768


# ----------------------------------------------------------------------------
# Pallas kernel: per-point 6-face recon loss (cal_recon_loss_point)
# ----------------------------------------------------------------------------
# Packed slab row layout (component-major, points on the lane axis):
#   rows  0: 6  fn_x[face, :]
#   rows  6:12  fn_y[face, :]
#   rows 12:18  fn_z[face, :]
#   rows 18:24  fd  [face, :]
#   rows 24:30  ff  [face, :]
#   row  30     pc_x,  row 31  pc_y,  row 32  pc_z
_SLAB_ROWS = 33


def _make_point_loss_kernel(tn, n_true, half_tiles, needs_mask):
    """Grid cell (b, s, t): one point tile of one batch element / point split.

    Refs:
      slab_ref (33, tn)   packed per-point data (see layout above)
      dirs_ref (3, 6, 1)  GT face directions, component-major
      cvec_ref (6, 1)     GT distance offsets
      out_ref  (6, 3)     per-(b,s) accumulator: [sum(1-ndot), sum|d-dgt|, sum|f-ff|]
    """

    def kernel(slab_ref, dirs_ref, cvec_ref, out_ref):
        s = pl.program_id(1)
        t = pl.program_id(2)

        @pl.when(t == 0)
        def _init():
            out_ref[...] = jnp.zeros_like(out_ref)

        fnx = slab_ref[pl.ds(0, 6), :]      # (6, tn)
        fny = slab_ref[pl.ds(6, 6), :]
        fnz = slab_ref[pl.ds(12, 6), :]
        fd = slab_ref[pl.ds(18, 6), :]
        ff = slab_ref[pl.ds(24, 6), :]
        px = slab_ref[pl.ds(30, 1), :]      # (1, tn)
        py = slab_ref[pl.ds(31, 1), :]
        pz = slab_ref[pl.ds(32, 1), :]

        dx = dirs_ref[0]                    # (6, 1)
        dy = dirs_ref[1]
        dz = dirs_ref[2]
        cv = cvec_ref[...]                  # (6, 1)

        # GT signed distance of every point to every face (unrolled 3-vec dot):
        #   d_gt[f, :] = cvec[f] - dir[f] . pc
        d_gt = cv - (dx * px + dy * py + dz * pz)             # (6, tn)

        # normal alignment: 1 - n_pred . dir_gt
        loss_n = 1.0 - (dx * fnx + dy * fny + dz * fnz)

        # distance: |d_pred - d_gt|
        loss_d = jnp.abs(fd - d_gt)

        # confidence: f = exp(-303.5 * ||n_pred*d_pred - dir_gt*d_gt||^2)
        ex = fnx * fd - dx * d_gt
        ey = fny * fd - dy * d_gt
        ez = fnz * fd - dz * d_gt
        f_pred = jnp.exp(-303.5 * (ex * ex + ey * ey + ez * ez))
        loss_f = jnp.abs(f_pred - ff)

        def _accum(ln, ld, lf):
            out_ref[:, 0:1] += jnp.sum(ln, axis=1, keepdims=True)
            out_ref[:, 1:2] += jnp.sum(ld, axis=1, keepdims=True)
            out_ref[:, 2:3] += jnp.sum(lf, axis=1, keepdims=True)

        if needs_mask:
            # global point-tile index; only the edge / phantom tile needs a mask
            g = s * half_tiles + t
            is_full = (g + 1) * tn <= n_true

            @pl.when(is_full)
            def _full():
                _accum(loss_n, loss_d, loss_f)

            @pl.when(jnp.logical_not(is_full))
            def _edge():
                # OOB lanes of a ragged block hold garbage -> use where, not *.
                lane = jax.lax.broadcasted_iota(jnp.int32, (1, tn), 1)
                valid = (g * tn + lane) < n_true
                _accum(jnp.where(valid, loss_n, 0.0),
                       jnp.where(valid, loss_d, 0.0),
                       jnp.where(valid, loss_f, 0.0))
        else:
            _accum(loss_n, loss_d, loss_f)

    return kernel


def cal_recon_loss_point(pc, face_normal, face_dis, face_f, gt_R, gt_t, gt_s,
                         mean_shape, sym, obj_ids, *, tile_n=None):
    """pc (bs,n,3); face_normal (bs,n,6,3); face_dis/face_f (bs,n,6);
    gt_R (bs,3,3); gt_t/gt_s/mean_shape (bs,3); sym (bs,k); obj_ids (bs,)."""
    f32 = jnp.float32
    pc = pc.astype(f32)
    face_normal = face_normal.astype(f32)
    face_dis = face_dis.astype(f32)
    face_f = face_f.astype(f32)
    gt_R = gt_R.astype(f32)
    gt_t = gt_t.astype(f32)
    bs, n, _ = pc.shape
    re_s = (gt_s + mean_shape).astype(f32)                               # (bs, 3)

    # face order: y+, x+, z+, x-, z-, y-   (axis, sign) as in the reference code
    axes = jnp.array([1, 0, 2, 0, 2, 1], dtype=jnp.int32)
    signs = jnp.array([-1., -1., -1., 1., 1., 1.], dtype=f32)

    # R columns as rows: R_cols[b, a, :] = gt_R[b, :, a]
    R_cols = jnp.transpose(gt_R, (0, 2, 1))                              # (bs,3,3)
    R_sel = R_cols[:, axes, :]                                           # (bs,6,3)
    dirs = -signs[None, :, None] * R_sel                                 # (bs,6,3)
    # d_gt[f] = sign_f * (r_{a_f} . (pc - t)) + s[a_f]/2
    #         = -dirs[f] . pc + (s[a_f]/2 - sign_f * r_{a_f} . t)
    cvec = re_s[:, axes] / 2.0 - signs[None, :] * jnp.einsum(
        'bfc,bc->bf', R_sel, gt_t)                                       # (bs,6)

    # per-face weights (applied in JAX on the tiny per-batch kernel output)
    sym0 = (sym[:, 0] == 0).astype(f32)                                  # (bs,)
    not5 = (obj_ids.astype(jnp.int32) != 5).astype(f32)                  # (bs,)
    ones = jnp.ones_like(sym0)
    wn = jnp.stack([ones, sym0, sym0, sym0, sym0, ones], axis=1)         # (bs,6)
    wx = sym0 * not5
    wd = jnp.stack([ones, wx, sym0, wx, sym0, ones], axis=1)             # (bs,6)
    w = jnp.stack([wn, wd, wd], axis=2)                                  # (bs,6,3)

    # One packed, component-major slab: (bs, 33, n).  No jnp.pad of the data.
    # (Ideally the producing network would emit channels-first directly.)
    fn_k = jnp.transpose(face_normal, (0, 3, 2, 1)).reshape(bs, 18, n)   # (bs,18,n)
    fd_k = jnp.transpose(face_dis, (0, 2, 1))                            # (bs,6,n)
    ff_k = jnp.transpose(face_f, (0, 2, 1))                              # (bs,6,n)
    pc_k = jnp.transpose(pc, (0, 2, 1))                                  # (bs,3,n)
    slab = jnp.concatenate([fn_k, fd_k, ff_k, pc_k], axis=1)             # (bs,33,n)

    dirs_k = jnp.transpose(dirs, (0, 2, 1))[..., None]                   # (bs,3,6,1)
    cvec_k = cvec[..., None]                                             # (bs,6,1)

    # Point-axis tiling (lane axis).  The last tile may be ragged (masked).
    if tile_n is None:
        tile_n = _default_tile_n()
    tile_n = max(128, (tile_n // 128) * 128)
    if n <= tile_n:
        tn, total = n, 1        # single block; lane dim == full array dim is OK
    else:
        tn, total = tile_n, _cdiv(n, tile_n)

    # 2-way point split (second "parallel" grid axis) so both v7x TCs get work
    # even for bs == 1.  Phantom tiles (odd tile count) are clamped + masked.
    n_split = 2 if total >= 2 else 1
    half = _cdiv(total, n_split)
    needs_mask = (n_split * half * tn != n)

    kernel = _make_point_loss_kernel(tn, n, half, needs_mask)

    def slab_map(b, s, t):
        # clamp keeps the DMA in-bounds for phantom tiles (their contribution
        # is zeroed by the in-kernel mask).
        return (b, 0, jnp.minimum(s * half + t, total - 1))

    out = pl.pallas_call(
        kernel,
        out_shape=jax.ShapeDtypeStruct((bs, n_split, 6, 3), f32),
        grid=(bs, n_split, half),
        in_specs=[
            pl.BlockSpec((None, _SLAB_ROWS, tn), slab_map),
            # tiny per-batch side inputs: index maps constant in (s, t)
            pl.BlockSpec((None, 3, 6, 1), lambda b, s, t: (b, 0, 0, 0)),
            pl.BlockSpec((None, 6, 1), lambda b, s, t: (b, 0, 0)),
        ],
        out_specs=pl.BlockSpec((None, None, 6, 3), lambda b, s, t: (b, s, 0, 0)),
        compiler_params=pltpu.CompilerParams(
            dimension_semantics=("parallel", "parallel", "arbitrary"),
            vmem_limit_bytes=48 * 1024 * 1024),
    )(slab, dirs_k, cvec_k)                                              # (bs,2,6,3)

    per_batch = jnp.sum(out, axis=1)                                     # (bs,6,3)
    totals = jnp.sum(w * per_batch, axis=(0, 1)) / (6.0 * bs * n)        # (3,)
    return totals[0], totals[1], totals[2]   # res_normal, res_dis, res_f


# ----------------------------------------------------------------------------
# Pallas kernel: L1 loss (cal_recon_loss_sample) — lane-dense tiled reduction
# ----------------------------------------------------------------------------
def _make_l1_kernel(tl, m_true, needs_mask):
    def kernel(a_ref, b_ref, out_ref):
        i = pl.program_id(0)

        @pl.when(i == 0)
        def _init():
            out_ref[...] = jnp.zeros_like(out_ref)

        diff = jnp.abs(a_ref[...] - b_ref[...])
        if needs_mask:
            lane = jax.lax.broadcasted_iota(jnp.int32, (1, tl), 1)
            valid = (i * tl + lane) < m_true
            diff = jnp.where(valid, diff, 0.0)
        out_ref[...] += jnp.sum(diff, keepdims=True)

    return kernel


def cal_recon_loss_sample(pc_sk, face_c, *, lane_tile=None):
    a = pc_sk.astype(jnp.float32)
    b = face_c.astype(jnp.float32)
    bs = a.shape[0]
    a2 = a.reshape(bs, -1)          # free reshape, no pad copies
    b2 = b.reshape(bs, -1)
    m = a2.shape[1]

    if lane_tile is None:
        row8 = _cdiv(bs, 8) * 8
        lane_tile = min(32768, max(128, ((1 << 20) // (4 * row8)) // 128 * 128))
    lane_tile = max(128, (lane_tile // 128) * 128)

    if m <= lane_tile:
        tl, n_tiles, needs_mask = m, 1, False
    else:
        tl = lane_tile
        n_tiles = _cdiv(m, tl)
        needs_mask = (m % tl != 0)

    out = pl.pallas_call(
        _make_l1_kernel(tl, m, needs_mask),
        out_shape=jax.ShapeDtypeStruct((1, 1), jnp.float32),
        grid=(n_tiles,),
        in_specs=[pl.BlockSpec((bs, tl), lambda i: (0, i)),
                  pl.BlockSpec((bs, tl), lambda i: (0, i))],
        out_specs=pl.BlockSpec((1, 1), lambda i: (0, 0)),
        compiler_params=pltpu.CompilerParams(
            dimension_semantics=("arbitrary",)),
    )(a2, b2)
    return out[0, 0] / (bs * m)


def cal_recon_loss_direct(face_c):
    return 0.0


# ----------------------------------------------------------------------------
# forward() of recon_6face_loss
# ----------------------------------------------------------------------------
def recon_6face_loss_forward(name_list, pred_list, gt_list, sym, obj_ids,
                             save_path=None):
    loss_list = {}
    if 'Per_point' in name_list:
        res_normal, res_dis, res_f = cal_recon_loss_point(
            gt_list['Points'], pred_list['F_n'], pred_list['F_d'],
            pred_list['F_c'], gt_list['R'], gt_list['T'], gt_list['Size'],
            gt_list['Mean_shape'], sym, obj_ids)
        loss_list['recon_per_p'] = (FLAGS.recon_n_w * res_normal
                                    + FLAGS.recon_d_w * res_dis)
        loss_list['recon_p_f'] = FLAGS.recon_f_w * res_f
    # TODO(synk): 'Point_voting' (cal_recon_loss_vote) needs external
    # get_plane / get_vertical_rot_vec / weighter which are not in the module.
    if 'Point_sampling' in name_list:
        loss_list['recon_point_sample'] = FLAGS.recon_s_w * cal_recon_loss_sample(
            pred_list['Pc_sk'], pred_list['F_c'])
    if 'Point_c_reg' in name_list:
        loss_list['recon_point_c_reg'] = FLAGS.recon_c_w * cal_recon_loss_direct(
            pred_list['F_c'])
    return loss_list


# ----------------------------------------------------------------------------
# pure-numpy reference of cal_recon_loss_point (mirrors the torch loop)
# ----------------------------------------------------------------------------
def _reference_point_loss(pc, fn, fd, ff, gt_R, gt_t, gt_s, mean_shape, sym,
                          obj_ids):
    pc, fn, fd, ff, gt_R, gt_t, gt_s, mean_shape, sym, obj_ids = [
        np.asarray(x, dtype=np.float64) for x in
        (pc, fn, fd, ff, gt_R, gt_t, gt_s, mean_shape, sym, obj_ids)]
    bs = pc.shape[0]
    re_s = gt_s + mean_shape
    pc_proj = np.einsum('bji,bnj->bni', gt_R, pc - gt_t[:, None, :])
    axes = [1, 0, 2, 0, 2, 1]
    signs = [-1., -1., -1., 1., 1., 1.]
    res_n = res_d = res_f = 0.0
    for i in range(bs):
        sym0 = (sym[i, 0] == 0)
        not5 = (int(obj_ids[i]) != 5)
        for f in range(6):
            a, s = axes[f], signs[f]
            direc = -s * gt_R[i, :, a]
            d_gt = s * pc_proj[i, :, a] + re_s[i, a] / 2.0
            rn_f = np.mean(1.0 - fn[i, :, f, :] @ direc)
            rd_f = np.mean(np.abs(fd[i, :, f] - d_gt))
            cc = np.linalg.norm(fn[i, :, f, :] * fd[i, :, f][:, None]
                                - direc[None, :] * d_gt[:, None], axis=1)
            rf_f = np.mean(np.abs(np.exp(-303.5 * cc * cc) - ff[i, :, f]))
            wn = 1.0 if (f in (0, 5) or sym0) else 0.0
            if f in (0, 5):
                wd = 1.0
            elif f in (2, 4):
                wd = 1.0 if sym0 else 0.0
            else:
                wd = 1.0 if (sym0 and not5) else 0.0
            res_n += wn * rn_f
            res_d += wd * rd_f
            res_f += wd * rf_f
    return res_n / 6 / bs, res_d / 6 / bs, res_f / 6 / bs


# ----------------------------------------------------------------------------
if __name__ == "__main__":
    key = jax.random.PRNGKey(0)
    bs, n = 2, 128
    ks = jax.random.split(key, 10)

    pc = jax.random.normal(ks[0], (bs, n, 3), jnp.float32)
    F_n = jax.random.normal(ks[1], (bs, n, 6, 3), jnp.float32)
    F_n = F_n / (jnp.linalg.norm(F_n, axis=-1, keepdims=True) + 1e-6)
    F_d = jax.random.normal(ks[2], (bs, n, 6), jnp.float32)
    F_c = jax.nn.sigmoid(jax.random.normal(ks[3], (bs, n, 6), jnp.float32))
    Pc_sk = jax.random.normal(ks[4], (bs, n, 6), jnp.float32)
    gt_R = jax.random.normal(ks[5], (bs, 3, 3), jnp.float32)
    gt_t = jax.random.normal(ks[6], (bs, 3), jnp.float32)
    gt_s = jax.random.uniform(ks[7], (bs, 3), jnp.float32, 0.5, 1.5)
    mean_shape = jax.random.uniform(ks[8], (bs, 3), jnp.float32, 0.2, 0.8)
    sym = jnp.array([[0, 0, 0, 0], [1, 0, 0, 0]], jnp.int32)
    obj_ids = jnp.array([5, 1], jnp.int32)

    pred_list = {'F_n': F_n, 'F_d': F_d, 'F_c': F_c, 'Pc_sk': Pc_sk}
    gt_list = {'Points': pc, 'R': gt_R, 'T': gt_t, 'Size': gt_s,
               'Mean_shape': mean_shape}
    name_list = ['Per_point', 'Point_sampling', 'Point_c_reg']

    losses = recon_6face_loss_forward(name_list, pred_list, gt_list, sym,
                                      obj_ids)
    for v in losses.values():
        if isinstance(v, jax.Array):
            jax.block_until_ready(v)

    # verify against pure-numpy reference of the torch semantics
    rn_ref, rd_ref, rf_ref = _reference_point_loss(
        pc, F_n, F_d, F_c, gt_R, gt_t, gt_s, mean_shape, sym, obj_ids)
    np.testing.assert_allclose(float(losses['recon_per_p']),
                               FLAGS.recon_n_w * rn_ref + FLAGS.recon_d_w * rd_ref,
                               rtol=2e-3, atol=1e-4)
    np.testing.assert_allclose(float(losses['recon_p_f']),
                               FLAGS.recon_f_w * rf_ref, rtol=2e-3, atol=1e-4)
    np.testing.assert_allclose(float(losses['recon_point_sample']),
                               np.mean(np.abs(np.asarray(Pc_sk) - np.asarray(F_c))),
                               rtol=2e-3, atol=1e-5)

    # check 2: non-multiple-of-128 N with a small tile -> exercises the ragged
    # edge block, the jnp.where mask and the 2-way point split.
    n2 = 200
    ks2 = jax.random.split(jax.random.PRNGKey(1), 4)
    pc2 = jax.random.normal(ks2[0], (bs, n2, 3), jnp.float32)
    F_n2 = jax.random.normal(ks2[1], (bs, n2, 6, 3), jnp.float32)
    F_n2 = F_n2 / (jnp.linalg.norm(F_n2, axis=-1, keepdims=True) + 1e-6)
    F_d2 = jax.random.normal(ks2[2], (bs, n2, 6), jnp.float32)
    F_c2 = jax.nn.sigmoid(jax.random.normal(ks2[3], (bs, n2, 6), jnp.float32))
    rn2, rd2, rf2 = cal_recon_loss_point(
        pc2, F_n2, F_d2, F_c2, gt_R, gt_t, gt_s, mean_shape, sym, obj_ids,
        tile_n=128)
    rn2_ref, rd2_ref, rf2_ref = _reference_point_loss(
        pc2, F_n2, F_d2, F_c2, gt_R, gt_t, gt_s, mean_shape, sym, obj_ids)
    np.testing.assert_allclose(float(rn2), rn2_ref, rtol=2e-3, atol=1e-4)
    np.testing.assert_allclose(float(rd2), rd2_ref, rtol=2e-3, atol=1e-4)
    np.testing.assert_allclose(float(rf2), rf2_ref, rtol=2e-3, atol=1e-4)

    # check 3: odd tile count (3 tiles of 128) -> exercises the clamped
    # "phantom" tile of the 2-way split (fully masked, no OOB DMA).
    n3 = 384
    ks3 = jax.random.split(jax.random.PRNGKey(2), 4)
    pc3 = jax.random.normal(ks3[0], (bs, n3, 3), jnp.float32)
    F_n3 = jax.random.normal(ks3[1], (bs, n3, 6, 3), jnp.float32)
    F_n3 = F_n3 / (jnp.linalg.norm(F_n3, axis=-1, keepdims=True) + 1e-6)
    F_d3 = jax.random.normal(ks3[2], (bs, n3, 6), jnp.float32)
    F_c3 = jax.nn.sigmoid(jax.random.normal(ks3[3], (bs, n3, 6), jnp.float32))
    rn3, rd3, rf3 = cal_recon_loss_point(
        pc3, F_n3, F_d3, F_c3, gt_R, gt_t, gt_s, mean_shape, sym, obj_ids,
        tile_n=128)
    rn3_ref, rd3_ref, rf3_ref = _reference_point_loss(
        pc3, F_n3, F_d3, F_c3, gt_R, gt_t, gt_s, mean_shape, sym, obj_ids)
    np.testing.assert_allclose(float(rn3), rn3_ref, rtol=2e-3, atol=1e-4)
    np.testing.assert_allclose(float(rd3), rd3_ref, rtol=2e-3, atol=1e-4)
    np.testing.assert_allclose(float(rf3), rf3_ref, rtol=2e-3, atol=1e-4)

    # check 4: L1 sampling loss multi-tile / ragged-tail path.
    a_t = jax.random.normal(jax.random.PRNGKey(3), (2, 200, 6), jnp.float32)
    b_t = jax.random.normal(jax.random.PRNGKey(4), (2, 200, 6), jnp.float32)
    l1_val = cal_recon_loss_sample(a_t, b_t, lane_tile=256)
    np.testing.assert_allclose(
        float(l1_val), np.mean(np.abs(np.asarray(a_t) - np.asarray(b_t))),
        rtol=1e-4, atol=1e-6)

    print("KERNEL_OK")
</pallas_src>

<mosaic_0001>
module attributes {stable_mosaic.version = 11 : i64} {
  func.func @kernel(%arg0: i32, %arg1: i32, %arg2: i32, %arg3: memref<1x33x128xf32, #tpu.memory_space<vmem>>, %arg4: memref<1x3x6x1xf32, #tpu.memory_space<vmem>>, %arg5: memref<1x6x1xf32, #tpu.memory_space<vmem>>, %arg6: memref<1x1x6x3xf32, #tpu.memory_space<vmem>>) attributes {dimension_semantics = [#tpu.dimension_semantics<parallel>, #tpu.dimension_semantics<parallel>, #tpu.dimension_semantics<arbitrary>], iteration_bounds = array<i64: 2, 1, 1>, scalar_prefetch = 0 : i64, scratch_operands = 0 : i64, tpu.core_type = #tpu.core_type<tc>, window_params = [{transform_indices = @transform_0, window_bounds = array<i64: 1, 33, 128>}, {transform_indices = @transform_1, window_bounds = array<i64: 1, 3, 6, 1>}, {transform_indices = @transform_2, window_bounds = array<i64: 1, 6, 1>}, {transform_indices = @transform_3, window_bounds = array<i64: 1, 1, 6, 3>}]} {
    %c0_i32 = arith.constant 0 : i32
    %0 = arith.cmpi eq, %arg2, %c0_i32 : i32
    %1 = arith.extui %0 : i1 to i32
    %c0_i32_0 = arith.constant 0 : i32
    %2 = arith.cmpi ne, %1, %c0_i32_0 : i32
    scf.if %2 {
      %cst_58 = arith.constant 0.000000e+00 : f32
      %98 = vector.broadcast %cst_58 : f32 to vector<6x3xf32>
      %c0_59 = arith.constant 0 : index
      %c0_60 = arith.constant 0 : index
      %c0_61 = arith.constant 0 : index
      %c0_62 = arith.constant 0 : index
      %99 = vector.load %arg6[%c0_59, %c0_60, %c0_61, %c0_62] : memref<1x1x6x3xf32, #tpu.memory_space<vmem>>, vector<1x1x6x3xf32>
      %100 = vector.shape_cast %99 : vector<1x1x6x3xf32> to vector<6x3xf32>
      %101 = vector.shape_cast %98 : vector<6x3xf32> to vector<1x1x6x3xf32>
      tpu.vector_store %arg6[%c0_59, %c0_60, %c0_61, %c0_62], %101 {strides = array<i32>} : memref<1x1x6x3xf32, #tpu.memory_space<vmem>>, vector<1x1x6x3xf32>,
    } else {
    }
    %c0 = arith.constant 0 : index
    %c0_1 = arith.constant 0 : index
    %c0_2 = arith.constant 0 : index
    %3 = vector.load %arg3[%c0, %c0_1, %c0_2] : memref<1x33x128xf32, #tpu.memory_space<vmem>>, vector<1x6x128xf32>
    %4 = vector.shape_cast %3 : vector<1x6x128xf32> to vector<6x128xf32>
    %c0_3 = arith.constant 0 : index
    %c6 = arith.constant 6 : index
    %c0_4 = arith.constant 0 : index
    %5 = vector.load %arg3[%c0_3, %c6, %c0_4] : memref<1x33x128xf32, #tpu.memory_space<vmem>>, vector<1x6x128xf32>
    %6 = vector.shape_cast %5 : vector<1x6x128xf32> to vector<6x128xf32>
    %c0_5 = arith.constant 0 : index
    %c12 = arith.constant 12 : index
    %c0_6 = arith.constant 0 : index
    %7 = vector.load %arg3[%c0_5, %c12, %c0_6] : memref<1x33x128xf32, #tpu.memory_space<vmem>>, vector<1x6x128xf32>
    %8 = vector.shape_cast %7 : vector<1x6x128xf32> to vector<6x128xf32>
    %c0_7 = arith.constant 0 : index
    %c18 = arith.constant 18 : index
    %c0_8 = arith.constant 0 : index
    %9 = vector.load %arg3[%c0_7, %c18, %c0_8] : memref<1x33x128xf32, #tpu.memory_space<vmem>>, vector<1x6x128xf32>
    %10 = vector.shape_cast %9 : vector<1x6x128xf32> to vector<6x128xf32>
    %c0_9 = arith.constant 0 : index
    %c24 = arith.constant 24 : index
    %c0_10 = arith.constant 0 : index
    %11 = vector.load %arg3[%c0_9, %c24, %c0_10] : memref<1x33x128xf32, #tpu.memory_space<vmem>>, vector<1x6x128xf32>
    %12 = vector.shape_cast %11 : vector<1x6x128xf32> to vector<6x128xf32>
    %c0_11 = arith.constant 0 : index
    %c30 = arith.constant 30 : index
    %c0_12 = arith.constant 0 : index
    %13 = vector.load %arg3[%c0_11, %c30, %c0_12] : memref<1x33x128xf32, #tpu.memory_space<vmem>>, vector<1x1x128xf32>
    %14 = vector.shape_cast %13 : vector<1x1x128xf32> to vector<1x128xf32>
    %c0_13 = arith.constant 0 : index
    %c31 = arith.constant 31 : index
    %c0_14 = arith.constant 0 : index
    %15 = vector.load %arg3[%c0_13, %c31, %c0_14] : memref<1x33x128xf32, #tpu.memory_space<vmem>>, vector<1x1x128xf32>
    %16 = vector.shape_cast %15 : vector<1x1x128xf32> to vector<1x128xf32>
    %c0_15 = arith.constant 0 : index
    %c32 = arith.constant 32 : index
    %c0_16 = arith.constant 0 : index
    %17 = vector.load %arg3[%c0_15, %c32, %c0_16] : memref<1x33x128xf32, #tpu.memory_space<vmem>>, vector<1x1x128xf32>
    %18 = vector.shape_cast %17 : vector<1x1x128xf32> to vector<1x128xf32>
    %c0_17 = arith.constant 0 : index
    %c0_18 = arith.constant 0 : index
    %c0_19 = arith.constant 0 : index
    %c0_20 = arith.constant 0 : index
    %19 = vector.load %arg4[%c0_17, %c0_18, %c0_19, %c0_20] : memref<1x3x6x1xf32, #tpu.memory_space<vmem>>, vector<1x1x6x1xf32>
    %20 = vector.shape_cast %19 : vector<1x1x6x1xf32> to vector<6x1xf32>
    %c0_21 = arith.constant 0 : index
    %c1 = arith.constant 1 : index
    %c0_22 = arith.constant 0 : index
    %c0_23 = arith.constant 0 : index
    %21 = vector.load %arg4[%c0_21, %c1, %c0_22, %c0_23] : memref<1x3x6x1xf32, #tpu.memory_space<vmem>>, vector<1x1x6x1xf32>
    %22 = vector.shape_cast %21 : vector<1x1x6x1xf32> to vector<6x1xf32>
    %c0_24 = arith.constant 0 : index
    %c2 = arith.constant 2 : index
    %c0_25 = arith.constant 0 : index
    %c0_26 = arith.constant 0 : index
    %23 = vector.load %arg4[%c0_24, %c2, %c0_25, %c0_26] : memref<1x3x6x1xf32, #tpu.memory_space<vmem>>, vector<1x1x6x1xf32>
    %24 = vector.shape_cast %23 : vector<1x1x6x1xf32> to vector<6x1xf32>
    %c0_27 = arith.constant 0 : index
    %c0_28 = arith.constant 0 : index
    %c0_29 = arith.constant 0 : index
    %25 = vector.load %arg5[%c0_27, %c0_28, %c0_29] : memref<1x6x1xf32, #tpu.memory_space<vmem>>, vector<1x6x1xf32>
    %26 = vector.shape_cast %25 : vector<1x6x1xf32> to vector<6x1xf32>
    %27 = vector.broadcast %20 : vector<6x1xf32> to vector<6x128xf32>
    %28 = vector.broadcast %14 : vector<1x128xf32> to vector<6x128xf32>
    %29 = arith.mulf %27, %28 : vector<6x128xf32>
    %30 = vector.broadcast %22 : vector<6x1xf32> to vector<6x128xf32>
    %31 = vector.broadcast %16 : vector<1x128xf32> to vector<6x128xf32>
    %32 = arith.mulf %30, %31 : vector<6x128xf32>
    %33 = arith.addf %29, %32 : vector<6x128xf32>
    %34 = vector.broadcast %24 : vector<6x1xf32> to vector<6x128xf32>
    %35 = vector.broadcast %18 : vector<1x128xf32> to vector<6x128xf32>
    %36 = arith.mulf %34, %35 : vector<6x128xf32>
    %37 = arith.addf %33, %36 : vector<6x128xf32>
    %38 = vector.broadcast %26 : vector<6x1xf32> to vector<6x128xf32>
    %39 = arith.subf %38, %37 : vector<6x128xf32>
    %40 = vector.broadcast %20 : vector<6x1xf32> to vector<6x128xf32>
    %41 = arith.mulf %40, %4 : vector<6x128xf32>
    %42 = vector.broadcast %22 : vector<6x1xf32> to vector<6x128xf32>
    %43 = arith.mulf %42, %6 : vector<6x128xf32>
    %44 = arith.addf %41, %43 : vector<6x128xf32>
    %45 = vector.broadcast %24 : vector<6x1xf32> to vector<6x128xf32>
    %46 = arith.mulf %45, %8 : vector<6x128xf32>
    %47 = arith.addf %44, %46 : vector<6x128xf32>
    %cst = arith.constant 1.000000e+00 : f32
    %48 = vector.broadcast %cst : f32 to vector<6x128xf32>
    %49 = arith.subf %48, %47 : vector<6x128xf32>
    %50 = arith.subf %10, %39 : vector<6x128xf32>
    %51 = math.absf %50 : vector<6x128xf32>
    %52 = arith.mulf %4, %10 : vector<6x128xf32>
    %53 = vector.broadcast %20 : vector<6x1xf32> to vector<6x128xf32>
    %54 = arith.mulf %53, %39 : vector<6x128xf32>
    %55 = arith.subf %52, %54 : vector<6x128xf32>
    %56 = arith.mulf %6, %10 : vector<6x128xf32>
    %57 = vector.broadcast %22 : vector<6x1xf32> to vector<6x128xf32>
    %58 = arith.mulf %57, %39 : vector<6x128xf32>
    %59 = arith.subf %56, %58 : vector<6x128xf32>
    %60 = arith.mulf %8, %10 : vector<6x128xf32>
    %61 = vector.broadcast %24 : vector<6x1xf32> to vector<6x128xf32>
    %62 = arith.mulf %61, %39 : vector<6x128xf32>
    %63 = arith.subf %60, %62 : vector<6x128xf32>
    %64 = arith.mulf %55, %55 : vector<6x128xf32>
    %65 = arith.mulf %59, %59 : vector<6x128xf32>
    %66 = arith.addf %64, %65 : vector<6x128xf32>
    %67 = arith.mulf %63, %63 : vector<6x128xf32>
    %68 = arith.addf %66, %67 : vector<6x128xf32>
    %cst_30 = arith.constant -3.035000e+02 : f32
    %69 = vector.broadcast %cst_30 : f32 to vector<6x128xf32>
    %70 = arith.mulf %69, %68 : vector<6x128xf32>
    %71 = math.exp %70 : vector<6x128xf32>
    %72 = arith.subf %71, %12 : vector<6x128xf32>
    %73 = math.absf %72 : vector<6x128xf32>
    %c0_31 = arith.constant 0 : index
    %c0_32 = arith.constant 0 : index
    %c0_33 = arith.constant 0 : index
    %c0_34 = arith.constant 0 : index
    %74 = vector.load %arg6[%c0_31, %c0_32, %c0_33, %c0_34] : memref<1x1x6x3xf32, #tpu.memory_space<vmem>>, vector<1x1x6x1xf32>
    %75 = vector.shape_cast %74 : vector<1x1x6x1xf32> to vector<6x1xf32>
    %cst_35 = arith.constant dense<0.000000e+00> : vector<6xf32>
    %76 = vector.multi_reduction <add>, %49, %cst_35 [1] : vector<6x128xf32> to vector<6xf32>
    %77 = vector.shape_cast %76 : vector<6xf32> to vector<6x1xf32>
    %78 = arith.addf %75, %77 : vector<6x1xf32>
    %c0_36 = arith.constant 0 : index
    %c0_37 = arith.constant 0 : index
    %c0_38 = arith.constant 0 : index
    %c0_39 = arith.constant 0 : index
    %79 = vector.load %arg6[%c0_36, %c0_37, %c0_38, %c0_39] : memref<1x1x6x3xf32, #tpu.memory_space<vmem>>, vector<1x1x6x1xf32>
    %80 = vector.shape_cast %79 : vector<1x1x6x1xf32> to vector<6x1xf32>
    %81 = vector.shape_cast %78 : vector<6x1xf32> to vector<1x1x6x1xf32>
    tpu.vector_store %arg6[%c0_36, %c0_37, %c0_38, %c0_39], %81 {strides = array<i32>} : memref<1x1x6x3xf32, #tpu.memory_space<vmem>>, vector<1x1x6x1xf32>,
    %c0_40 = arith.constant 0 : index
    %c0_41 = arith.constant 0 : index
    %c0_42 = arith.constant 0 : index
    %c1_43 = arith.constant 1 : index
    %82 = vector.load %arg6[%c0_40, %c0_41, %c0_42, %c1_43] : memref<1x1x6x3xf32, #tpu.memory_space<vmem>>, vector<1x1x6x1xf32>
    %83 = vector.shape_cast %82 : vector<1x1x6x1xf32> to vector<6x1xf32>
    %cst_44 = arith.constant dense<0.000000e+00> : vector<6xf32>
    %84 = vector.multi_reduction <add>, %51, %cst_44 [1] : vector<6x128xf32> to vector<6xf32>
    %85 = vector.shape_cast %84 : vector<6xf32> to vector<6x1xf32>
    %86 = arith.addf %83, %85 : vector<6x1xf32>
    %c0_45 = arith.constant 0 : index
    %c0_46 = arith.constant 0 : index
    %c0_47 = arith.constant 0 : index
    %c1_48 = arith.constant 1 : index
    %87 = vector.load %arg6[%c0_45, %c0_46, %c0_47, %c1_48] : memref<1x1x6x3xf32, #tpu.memory_space<vmem>>, vector<1x1x6x1xf32>
    %88 = vector.shape_cast %87 : vector<1x1x6x1xf32> to vector<6x1xf32>
    %89 = vector.shape_cast %86 : vector<6x1xf32> to vector<1x1x6x1xf32>
    tpu.vector_store %arg6[%c0_45, %c0_46, %c0_47, %c1_48], %89 {strides = array<i32>} : memref<1x1x6x3xf32, #tpu.memory_space<vmem>>, vector<1x1x6x1xf32>,
    %c0_49 = arith.constant 0 : index
    %c0_50 = arith.constant 0 : index
    %c0_51 = arith.constant 0 : index
    %c2_52 = arith.constant 2 : index
    %90 = vector.load %arg6[%c0_49, %c0_50, %c0_51, %c2_52] : memref<1x1x6x3xf32, #tpu.memory_space<vmem>>, vector<1x1x6x1xf32>
    %91 = vector.shape_cast %90 : vector<1x1x6x1xf32> to vector<6x1xf32>
    %cst_53 = arith.constant dense<0.000000e+00> : vector<6xf32>
    %92 = vector.multi_reduction <add>, %73, %cst_53 [1] : vector<6x128xf32> to vector<6xf32>
    %93 = vector.shape_cast %92 : vector<6xf32> to vector<6x1xf32>
    %94 = arith.addf %91, %93 : vector<6x1xf32>
    %c0_54 = arith.constant 0 : index
    %c0_55 = arith.constant 0 : index
    %c0_56 = arith.constant 0 : index
    %c2_57 = arith.constant 2 : index
    %95 = vector.load %arg6[%c0_54, %c0_55, %c0_56, %c2_57] : memref<1x1x6x3xf32, #tpu.memory_space<vmem>>, vector<1x1x6x1xf32>
    %96 = vector.shape_cast %95 : vector<1x1x6x1xf32> to vector<6x1xf32>
    %97 = vector.shape_cast %94 : vector<6x1xf32> to vector<1x1x6x1xf32>
    tpu.vector_store %arg6[%c0_54, %c0_55, %c0_56, %c2_57], %97 {strides = array<i32>} : memref<1x1x6x3xf32, #tpu.memory_space<vmem>>, vector<1x1x6x1xf32>,
    return
  }
  func.func @transform_0(%arg0: i32, %arg1: i32, %arg2: i32) -> (i32, i32, i32) {
    %c1_i32 = arith.constant 1 : i32
    %0 = arith.muli %arg1, %c1_i32 : i32
    %1 = arith.addi %0, %arg2 : i32
    %c0_i32 = arith.constant 0 : i32
    %2 = arith.minsi %1, %c0_i32 : i32
    %c0_i32_0 = arith.constant 0 : i32
    %c0_i32_1 = arith.constant 0 : i32
    return %arg0, %c0_i32_0, %2 : i32, i32, i32
  }
  func.func @transform_1(%arg0: i32, %arg1: i32, %arg2: i32) -> (i32, i32, i32, i32) {
    %c0_i32 = arith.constant 0 : i32
    %c0_i32_0 = arith.constant 0 : i32
    %c0_i32_1 = arith.constant 0 : i32
    %c0_i32_2 = arith.constant 0 : i32
    return %arg0, %c0_i32, %c0_i32_0, %c0_i32_1 : i32, i32, i32, i32
  }
  func.func @transform_2(%arg0: i32, %arg1: i32, %arg2: i32) -> (i32, i32, i32) {
    %c0_i32 = arith.constant 0 : i32
    %c0_i32_0 = arith.constant 0 : i32
    %c0_i32_1 = arith.constant 0 : i32
    return %arg0, %c0_i32, %c0_i32_0 : i32, i32, i32
  }
  func.func @transform_3(%arg0: i32, %arg1: i32, %arg2: i32) -> (i32, i32, i32, i32) {
    %c0_i32 = arith.constant 0 : i32
    %c0_i32_0 = arith.constant 0 : i32
    %c0_i32_1 = arith.constant 0 : i32
    return %arg0, %arg1, %c0_i32, %c0_i32_0 : i32, i32, i32, i32
  }
}

</mosaic_0001>

<llo_original>
// kernel: tpu_custom_call.1
$region0: #{tpu_custom_call.1}
  #allocation0 [shape = 'u32[]', space=smem, size = 0x4, offset = 0x4, fixed_abs, tag = 'smem constant byte address 0x4 - core index']
  #allocation1 [shape = 'u32[144,128]{1,0:T(1,128)}', space=vmem, size = 0x12000, scoped, tag = 'internal scratch']
  %s0 = inlined_call_operand.vmem [shape: f32[2,33,128], index: 0, kind: input, shape index: {}]
  %s1 = inlined_call_operand.vmem [shape: f32[2,3,6,1], index: 1, kind: input, shape index: {}]
  %s2 = inlined_call_operand.vmem [shape: f32[2,6,1], index: 2, kind: input, shape index: {}]
  %s3 = inlined_call_operand.vmem [shape: f32[2,1,6,3], index: 3, kind: output, shape index: {}]
  %s4 = sld [smem:[#allocation0]]
  $region49: #{tpu_custom_call.1} parent=0
    _
  %s6 = ssub.s32 1, %s4
  %s7 = scalar_select 0, %s6, %s4
  loop: start=0, step=1, limit=4
  $region2: #{tpu_custom_call.1} parent=0 // loop_pre_header
    _
  $region3: #{tpu_custom_call.1} parent=0 // loop_header
    %s9 = sphi 0, %s13
    %p10 = scmp.ge.s32.totalorder %s9, 4
    %s16 = sphi 0, %s35
    %s17 = sphi 0, %s31
    %s18 = sphi 0, %s27
    %s19 = sphi 0, %s16
    %s20 = sphi 0, %s17
    %s21 = sphi 0, %s18
    %s22 = sphi 0, %s19
    %s23 = sphi 0, %s20
    %s24 = sphi 0, %s21
    %s46 = sphi 0, %s48
    %s49 = sphi 0, %s46
    %s50 = sphi 0, %s49
    %s66 = sphi 0, %s50
    %s72 = sphi 0, %s74
    %s75 = sphi 0, %s72
    %s76 = sphi 0, %s75
    %s92 = sphi 0, %s76
    %s98 = sphi 0, %s100
    %s101 = sphi 0, %s98
    %s102 = sphi 0, %s101
    %s118 = sphi 0, %s102
    %s126 = sphi 0, %s128
    %s129 = sphi 0, %s126
    %s130 = sphi 0, %s129
    %s146 = sphi 0, %s130
  $region4: #{tpu_custom_call.1} parent=0 // loop_header_branch
    %12 = sbr.rel (%p10) target = $region8
  $region5: #{tpu_custom_call.1} parent=0 // loop_body
    %s14 = ssub.s32 %s9, 1
    %s15 = ssub.s32 %s9, 2
    %s25 = sadd.s32 1, %s18
    %p26 = scmp.ge.s32.totalorder %s25, 1
    %s27 = scalar_select %p26, 0, %s25
    %s28 = sadd.s32 1, %s17
    %s29 = scalar_select %p26, %s28, %s17
    %p30 = scmp.ge.s32.totalorder %s29, 1
    %s31 = scalar_select %p30, 0, %s29
    %s32 = sadd.s32 1, %s16
    %s33 = scalar_select %p30, %s32, %s16
    %p34 = scmp.ge.s32.totalorder %s33, 2
    %s35 = scalar_select %p34, 0, %s33
    %s36 = sadd.s32 %s17, %s18
    %p37 = scmp.lt.s32.totalorder %s36, 0
    %s38 = scalar_select %p37, %s36, 0
    %s39 = sadd.s32 %s31, %s27
    %p40 = scmp.lt.s32.totalorder %s39, 0
    %s41 = scalar_select %p40, %s39, 0
    %s42 = ssub.s32 %s16, %s35
    %s43 = ssub.s32 %s38, %s41
    %s44 = sor.u32 %s42, %s43
    %p45 = scmp.eq.s32.totalorder %s44, 0
    %s47 = sadd.s32 %s46, 1
    %s48 = scalar_select %p45, %s46, %s47
    %p51 = pneg %p45
    %p52 = scmp.eq.s32.totalorder %s9, 1
    %p53 = por %p51, %p52
    %p54 = scmp.ne.s32.totalorder %s46, %s49
    %p55 = scmp.eq.s32.totalorder %s9, 0
    %p56 = por %p54, %p55
    %p57 = scmp.ne.s32.totalorder %s46, %s49
    %p58 = scmp.eq.s32.totalorder %s14, 1
    %p59 = por %p57, %p58
    %p60 = scmp.ne.s32.totalorder %s49, %s50
    %p61 = scmp.eq.s32.totalorder %s14, 0
    %p62 = por %p60, %p61
    %p63 = scmp.ne.s32.totalorder %s49, %s50
    %p64 = scmp.eq.s32.totalorder %s15, 1
    %p65 = por %p63, %p64
    %p67 = scmp.ne.s32.totalorder %s50, %s66
    %p68 = scmp.eq.s32.totalorder %s15, 0
    %p69 = por %p67, %p68
    %s70 = ssub.s32 %s16, %s35
    %p71 = scmp.eq.s32.totalorder %s70, 0
    %s73 = sadd.s32 %s72, 1
    %s74 = scalar_select %p71, %s72, %s73
    %p77 = pneg %p71
    %p78 = scmp.eq.s32.totalorder %s9, 1
    %p79 = por %p77, %p78
    %p80 = scmp.ne.s32.totalorder %s72, %s75
    %p81 = scmp.eq.s32.totalorder %s9, 0
    %p82 = por %p80, %p81
    %p83 = scmp.ne.s32.totalorder %s72, %s75
    %p84 = scmp.eq.s32.totalorder %s14, 1
    %p85 = por %p83, %p84
    %p86 = scmp.ne.s32.totalorder %s75, %s76
    %p87 = scmp.eq.s32.totalorder %s14, 0
    %p88 = por %p86, %p87
    %p89 = scmp.ne.s32.totalorder %s75, %s76
    %p90 = scmp.eq.s32.totalorder %s15, 1
    %p91 = por %p89, %p90
    %p93 = scmp.ne.s32.totalorder %s76, %s92
    %p94 = scmp.eq.s32.totalorder %s15, 0
    %p95 = por %p93, %p94
    %s96 = ssub.s32 %s16, %s35
    %p97 = scmp.eq.s32.totalorder %s96, 0
    %s99 = sadd.s32 %s98, 1
    %s100 = scalar_select %p97, %s98, %s99
    %p103 = pneg %p97
    %p104 = scmp.eq.s32.totalorder %s9, 1
    %p105 = por %p103, %p104
    %p106 = scmp.ne.s32.totalorder %s98, %s101
    %p107 = scmp.eq.s32.totalorder %s9, 0
    %p108 = por %p106, %p107
    %p109 = scmp.ne.s32.totalorder %s98, %s101
    %p110 = scmp.eq.s32.totalorder %s14, 1
    %p111 = por %p109, %p110
    %p112 = scmp.ne.s32.totalorder %s101, %s102
    %p113 = scmp.eq.s32.totalorder %s14, 0
    %p114 = por %p112, %p113
    %p115 = scmp.ne.s32.totalorder %s101, %s102
    %p116 = scmp.eq.s32.totalorder %s15, 1
    %p117 = por %p115, %p116
    %p119 = scmp.ne.s32.totalorder %s102, %s118
    %p120 = scmp.eq.s32.totalorder %s15, 0
    %p121 = por %p119, %p120
    %s122 = ssub.s32 %s16, %s35
    %s123 = ssub.s32 %s17, %s31
    %s124 = sor.u32 %s122, %s123
    %p125 = scmp.eq.s32.totalorder %s124, 0
    %s127 = sadd.s32 %s126, 1
    %s128 = scalar_select %p125, %s126, %s127
    %p131 = pneg %p125
    %p132 = scmp.eq.s32.totalorder %s9, 1
    %p133 = por %p131, %p132
    %p134 = scmp.ne.s32.totalorder %s126, %s129
    %p135 = scmp.eq.s32.totalorder %s9, 0
    %p136 = por %p134, %p135
    %p137 = scmp.ne.s32.totalorder %s126, %s129
    %p138 = scmp.eq.s32.totalorder %s14, 1
    %p139 = por %p137, %p138
    %p140 = scmp.ne.s32.totalorder %s129, %s130
    %p141 = scmp.eq.s32.totalorder %s14, 0
    %p142 = por %p140, %p141
    %p143 = scmp.ne.s32.totalorder %s129, %s130
    %p144 = scmp.eq.s32.totalorder %s15, 1
    %p145 = por %p143, %p144
    %p147 = scmp.ne.s32.totalorder %s130, %s146
    %p148 = scmp.eq.s32.totalorder %s15, 0
    %p149 = por %p147, %p148
    %p150 = scmp.le.s32.totalorder 1, %s9
    %p151 = scmp.lt.s32.totalorder %s9, 3
    %p152 = pnand %p150, %p151
    %p153 = pneg %p152
    // Predicated region
    $region9: #{tpu_custom_call.1} parent=5 // pred_check
      _
    $region10: #{tpu_custom_call.1} parent=5 // pred_check_branch
      %155 = sbr.rel (%p152) target = $region12
    $region11: #{tpu_custom_call.1} parent=5 // pred_region
      %s156 = ssub.s32 %s9, 1
    $region12: #{tpu_custom_call.1} parent=5 // pred_fallthru
      _
    %p157 = scmp.lt.s32.totalorder %s9, 2
    // Predicated region
    $region13: #{tpu_custom_call.1} parent=5 // pred_check
      %p158 = pneg %p157
    $region14: #{tpu_custom_call.1} parent=5 // pred_check_branch
      %160 = sbr.rel (%p158) target = $region16
    $region15: #{tpu_custom_call.1} parent=5 // pred_region
      // Predicated region
      $region17: #{tpu_custom_call.1} parent=15 // pred_check
        %p161 = pneg %p56
      $region18: #{tpu_custom_call.1} parent=15 // pred_check_branch
        %163 = sbr.rel (%p161) target = $region20
      $region19: #{tpu_custom_call.1} parent=15 // pred_region
        %s164 = sadd.s32 %s17, %s18
        %p165 = scmp.lt.s32.totalorder %s164, 0
        %s166 = scalar_select %p165, %s164, 0
        %p167 = scmp.lt.s32.totalorder %s16, 1
        %s168 = scalar_select %p167, %s16, 1
        %p169 = scmp.lt.s32.totalorder %s166, 0
        %s170 = scalar_select %p169, %s166, 0
        %s171 = smul.addr %s168, 5
        %s172 = sadd.s32 %s170, %s171
        %s173 = smul.addr %s172, 8
        %s174 = scalar_lea.vmem %s0, %s173
        %s175 = sadd.s32 %s17, %s18
        %p176 = scmp.lt.s32.totalorder %s175, 0
        %s177 = scalar_select %p176, %s175, 0
      $region20: #{tpu_custom_call.1} parent=15 // pred_fallthru
        _
      // Predicated region
      $region21: #{tpu_custom_call.1} parent=15 // pred_check
        %p178 = pneg %p82
      $region22: #{tpu_custom_call.1} parent=15 // pred_check_branch
        %180 = sbr.rel (%p178) target = $region24
      $region23: #{tpu_custom_call.1} parent=15 // pred_region
        %p181 = scmp.lt.s32.totalorder %s16, 1
        %s182 = scalar_select %p181, %s16, 1
        %s183 = smul.addr %s182, 3
        %s184 = smul.addr %s183, 8
        %s185 = scalar_lea.vmem %s1, %s184
      $region24: #{tpu_custom_call.1} parent=15 // pred_fallthru
        _
      // Predicated region
      $region25: #{tpu_custom_call.1} parent=15 // pred_check
        %p186 = pneg %p108
      $region26: #{tpu_custom_call.1} parent=15 // pred_check_branch
        %188 = sbr.rel (%p186) target = $region28
      $region27: #{tpu_custom_call.1} parent=15 // pred_region
        %p189 = scmp.lt.s32.totalorder %s16, 1
        %s190 = scalar_select %p189, %s16, 1
        %s191 = smul.addr %s190, 8
        %s192 = scalar_lea.vmem %s2, %s191
      $region28: #{tpu_custom_call.1} parent=15 // pred_fallthru
        _
    $region16: #{tpu_custom_call.1} parent=5 // pred_fallthru
      _
    %p193 = scmp.le.s32.totalorder 1, %s9
    %p194 = scmp.lt.s32.totalorder %s9, 3
    %p195 = pnand %p193, %p194
    %p196 = pneg %p195
    // Predicated region
    $region29: #{tpu_custom_call.1} parent=5 // pred_check
      _
    $region30: #{tpu_custom_call.1} parent=5 // pred_check_branch
      %198 = sbr.rel (%p195) target = $region32
    $region31: #{tpu_custom_call.1} parent=5 // pred_region
      %s199 = ssub.s32 %s9, 1
      %s200 = sadd.s32 %s20, %s21
      %p201 = scmp.lt.s32.totalorder %s200, 0
      %s202 = scalar_select %p201, %s200, 0
      %p203 = scmp.lt.s32.totalorder %s19, 1
      %s204 = scalar_select %p203, %s19, 1
      %p205 = scmp.lt.s32.totalorder %s202, 0
      %s206 = scalar_select %p205, %s202, 0
      %s207 = smul.addr %s204, 5
      %s208 = sadd.s32 %s206, %s207
      %s209 = smul.addr %s208, 8
      %s210 = scalar_lea.vmem %s0, %s209
      %p211 = pneg %p62
      %p212 = pneg %p59
      %p213 = scmp.lt.s32.totalorder %s19, 1
      %s214 = scalar_select %p213, %s19, 1
      %s215 = smul.addr %s214, 3
      %s216 = smul.addr %s215, 8
      %s217 = scalar_lea.vmem %s1, %s216
      %p218 = pneg %p88
      %p219 = pneg %p85
      %p220 = scmp.lt.s32.totalorder %s19, 1
      %s221 = scalar_select %p220, %s19, 1
      %s222 = smul.addr %s221, 8
      %s223 = scalar_lea.vmem %s2, %s222
      %p224 = pneg %p114
      %p225 = pneg %p111
      %p226 = pneg %p142
      %p227 = pneg %p139
      %p228 = scmp.lt.s32.totalorder %s19, 1
      %s229 = scalar_select %p228, %s19, 1
      %p230 = scmp.lt.s32.totalorder %s20, 0
      %s231 = scalar_select %p230, %s20, 0
      %s232 = sadd.s32 %s231, %s229
      %s233 = smul.addr %s232, 8
      %s234 = scalar_lea.vmem %s3, %s233
      %s235 = sadd.s32 %s20, %s21
      %p236 = scmp.lt.s32.totalorder %s235, 0
      %s237 = scalar_select %p236, %s235, 0
      %p238 = scmp.lt.s32.totalorder %s19, 1
      %s239 = scalar_select %p238, %s19, 1
      %p240 = scmp.lt.s32.totalorder %s237, 0
      %s241 = scalar_select %p240, %s237, 0
      %s242 = smul.addr %s239, 5
      %s243 = sadd.s32 %s241, %s242
      %s244 = smul.addr %s243, 8
      %s245 = scalar_lea.vmem %s0, %s244
      %s246 = sadd.s32 %s20, %s21
      %p247 = scmp.lt.s32.totalorder %s246, 0
      %s248 = scalar_select %p247, %s246, 0
      %p249 = scmp.lt.s32.totalorder %s19, 1
      %s250 = scalar_select %p249, %s19, 1
      %s251 = smul.addr %s250, 3
      %s252 = smul.addr %s251, 8
      %s253 = scalar_lea.vmem %s1, %s252
      %p254 = scmp.lt.s32.totalorder %s19, 1
      %s255 = scalar_select %p254, %s19, 1
      %s256 = smul.addr %s255, 8
      %s257 = scalar_lea.vmem %s2, %s256
      %p258 = scmp.lt.s32.totalorder %s19, 1
      %s259 = scalar_select %p258, %s19, 1
      %p260 = scmp.lt.s32.totalorder %s20, 0
      %s261 = scalar_select %p260, %s20, 0
      %s262 = sadd.s32 %s261, %s259
      %s263 = smul.addr %s262, 8
      %s264 = scalar_lea.vmem %s3, %s263
      %p265 = scmp.eq.s32.totalorder %s21, 0
      // Predicated region
      $region33: #{tpu_custom_call.1} parent=31 // pred_check
        %p266 = pneg %p265
      $region34: #{tpu_custom_call.1} parent=31 // pred_check_branch
        %268 = sbr.rel (%p266) target = $region36
      $region35: #{tpu_custom_call.1} parent=31 // pred_region
        %vm269 = vcmask 21504
        %270 = vst.msk [vmem:[%s264] sm:$0x3f] %vm269, 0.0
      $region36: #{tpu_custom_call.1} parent=31 // pred_fallthru
        _
      %v271 = vld [vmem:[%s245] sm:$0x3f]
      %v272 = vld [vmem:[%s245 + $0x6] sm:$0x3f]
      %v273 = vld [vmem:[%s245 + $0xc] sm:$0x3f]
      %v274 = vld [vmem:[%s245 + $0x12] sm:$0x3f]
      %v275 = vld [vmem:[%s245 + $0x18] sm:$0x3f]
      %v276 = vld [vmem:[%s245 + $0x1e] sm:$0x1]
      %v277 = vld [vmem:[%s245 + $0x1f] sm:$0x1]
      %v278 = vld [vmem:[%s245 + $0x20] sm:$0x1]
      %v279 = vld [vmem:[%s253] sm:$0x3f]
      %s280 = scalar_lea.vmem %s253, 8
      %v281 = vld [vmem:[%s280] sm:$0x3f]
      %s282 = scalar_lea.vmem %s253, 16
      %v283 = vld [vmem:[%s282] sm:$0x3f]
      %v284 = vld [vmem:[%s257] sm:$0x3f]
      %286 = vset.pattern.permute.xlu0 0
      %287 = vperm.xlu0 %286, %v279
      %v288 = vpop.permute.xlu0 %287
      %v290 = vlaneseq
      %v291 = vshrl.u32 %v290, 7
      %v292 = vsub.s32 0, %v291
      %v293 = vrot.slane %v276, %v292
      %v294 = vmul.f32 %v288, %v293
      %296 = vset.pattern.permute.xlu0 0
      %297 = vperm.xlu0 %296, %v281
      %v298 = vpop.permute.xlu0 %297
      %v300 = vlaneseq
      %v301 = vshrl.u32 %v300, 7
      %v302 = vsub.s32 0, %v301
      %v303 = vrot.slane %v277, %v302
      %v304 = vmul.f32 %v298, %v303
      %v305 = vadd.f32 %v294, %v304
      %307 = vset.pattern.permute.xlu0 0
      %308 = vperm.xlu0 %307, %v283
      %v309 = vpop.permute.xlu0 %308
      %v311 = vlaneseq
      %v312 = vshrl.u32 %v311, 7
      %v313 = vsub.s32 0, %v312
      %v314 = vrot.slane %v278, %v313
      %v315 = vmul.f32 %v309, %v314
      %v316 = vadd.f32 %v305, %v315
      %318 = vset.pattern.permute.xlu0 0
      %319 = vperm.xlu0 %318, %v284
      %v320 = vpop.permute.xlu0 %319
      %v322 = vsub.f32 %v320, %v316
      %v323 = vmul.f32 %v288, %v271
      %v324 = vmul.f32 %v298, %v272
      %v325 = vadd.f32 %v323, %v324
      %v326 = vmul.f32 %v309, %v273
      %v327 = vadd.f32 %v325, %v326
      %v328 = vsub.f32 1.0, %v327
      %v329 = vsub.f32 %v274, %v322
      %v330 = vand.u32 2147483647, %v329
      %v331 = vmul.f32 %v271, %v274
      %v332 = vmul.f32 %v288, %v322
      %v333 = vsub.f32 %v331, %v332
      %v334 = vmul.f32 %v272, %v274
      %v335 = vmul.f32 %v298, %v322
      %v336 = vsub.f32 %v334, %v335
      %v337 = vmul.f32 %v273, %v274
      %v338 = vmul.f32 %v309, %v322
      %v339 = vsub.f32 %v337, %v338
      %v340 = vmul.f32 %v333, %v333
      %v341 = vmul.f32 %v336, %v336
      %v342 = vadd.f32 %v340, %v341
      %v343 = vmul.f32 %v339, %v339
      %v344 = vadd.f32 %v342, %v343
      %v345 = vmul.f32 %v344, -303.5
      %v346 = vmul.f32 %v345, 1.442695
      %v347 = vpow.pop %v346
      %v348 = vsub.f32 %v347, %v275
      %v349 = vand.u32 2147483647, %v348
      %v350 = vld [vmem:[%s264] sm:$0x3f]
      %vm351 = vcmask 1045504
      %v352 = vsel %vm351, %v328, 0.0
      %353 = vadd.xlane.f32.xlu0 %v352
      %v354 = vpop.xlane.xlu0 %353
      %v355 = vadd.f32 %v350, %v354
      %vm356 = vcmask 5120
      %357 = vst.msk [vmem:[%s264] sm:$0x3f] %vm356, %v355
      %v358 = vld [vmem:[%s264] sm:$0x3f]
      %v359 = vsel %vm351, %v330, 0.0
      %360 = vadd.xlane.f32.xlu0 %v359
      %v361 = vpop.xlane.xlu0 %360
      %v362 = vadd.f32 %v358, %v361
      %vm363 = vcmask 13320
      %364 = vst.msk [vmem:[%s264] sm:$0x3f] %vm363, %v362
      %v365 = vld [vmem:[%s264] sm:$0x3f]
      %v366 = vsel %vm351, %v349, 0.0
      %367 = vadd.xlane.f32.xlu0 %v366
      %v368 = vpop.xlane.xlu0 %367
      %v369 = vadd.f32 %v365, %v368
      %vm370 = vcmask 21520
      %371 = vst.msk [vmem:[%s264] sm:$0x3f] %vm370, %v369
      %p372 = scmp.lt.s32.totalorder %s19, 1
      %s373 = scalar_select %p372, %s19, 1
      %p374 = scmp.lt.s32.totalorder %s20, 0
      %s375 = scalar_select %p374, %s20, 0
      %s376 = sadd.s32 %s375, %s373
      %s377 = smul.addr %s376, 8
      %s378 = scalar_lea.vmem %s3, %s377
      // Predicated region
      $region37: #{tpu_custom_call.1} parent=31 // pred_check
        %p379 = pneg %p139
      $region38: #{tpu_custom_call.1} parent=31 // pred_check_branch
        %381 = sbr.rel (%p379) target = $region40
      $region39: #{tpu_custom_call.1} parent=31 // pred_region
        _
      $region40: #{tpu_custom_call.1} parent=31 // pred_fallthru
        _
    $region32: #{tpu_custom_call.1} parent=5 // pred_fallthru
      _
    %p382 = scmp.le.s32.totalorder 2, %s9
    // Predicated region
    $region41: #{tpu_custom_call.1} parent=5 // pred_check
      %p383 = pneg %p382
    $region42: #{tpu_custom_call.1} parent=5 // pred_check_branch
      %385 = sbr.rel (%p383) target = $region44
    $region43: #{tpu_custom_call.1} parent=5 // pred_region
      %s386 = ssub.s32 %s9, 2
      // Predicated region
      $region45: #{tpu_custom_call.1} parent=43 // pred_check
        %p387 = pneg %p145
      $region46: #{tpu_custom_call.1} parent=43 // pred_check_branch
        %389 = sbr.rel (%p387) target = $region48
      $region47: #{tpu_custom_call.1} parent=43 // pred_region
        %p390 = scmp.lt.s32.totalorder %s22, 1
        %s391 = scalar_select %p390, %s22, 1
        %p392 = scmp.lt.s32.totalorder %s23, 0
        %s393 = scalar_select %p392, %s23, 0
        %s394 = sadd.s32 %s393, %s391
        %s395 = smul.addr %s394, 8
        %s396 = scalar_lea.vmem %s3, %s395
      $region48: #{tpu_custom_call.1} parent=43 // pred_fallthru
        _
    $region44: #{tpu_custom_call.1} parent=5 // pred_fallthru
      _
  $region6: #{tpu_custom_call.1} parent=0 // loop_footer
    %s13 = sadd.s32 1, %s9
  $region7: #{tpu_custom_call.1} parent=0 // loop_footer_branch
    %8 = sbr.rel target = $region3
  $region8: #{tpu_custom_call.1} parent=0 // loop_exit
    _

</llo_original>
